<compile_context>
chip_gen: v6e
topology: v6e:2x2x1
jax: 0.10.0
libtpu: 0.0.40
codegen_flags: <defaults>
</compile_context>

<pallas_src>
import functools

import jax
import jax.numpy as jnp
from jax.experimental import pallas as pl
from jax.experimental.pallas import tpu as pltpu


def _round_up(x, m):
    return ((x + m - 1) // m) * m


def _pad_to(x, shape):
    pads = [(0, t - s) for s, t in zip(x.shape, shape)]
    return jnp.pad(x, pads)


def _actor_kernel(x_ref, w1_ref, b1_ref, w2_ref, b2_ref, w3_ref, b3_ref, o_ref,
                  *, action_low, action_high):
    # x: (TB, S) bf16; weights bf16; biases f32; output f32.
    x = x_ref[...]

    # linear1 + relu (f32 accumulation on the MXU)
    h1 = jnp.dot(x, w1_ref[...], preferred_element_type=jnp.float32) + b1_ref[...]
    h1 = jnp.maximum(h1, 0.0).astype(jnp.bfloat16)

    # linear2 + relu
    h2 = jnp.dot(h1, w2_ref[...], preferred_element_type=jnp.float32) + b2_ref[...]
    h2 = jnp.maximum(h2, 0.0)

    # tanh -> head
    t = jnp.tanh(h2).astype(jnp.bfloat16)
    y = jnp.dot(t, w3_ref[...], preferred_element_type=jnp.float32) + b3_ref[...]

    # clamp to the (static) action range
    o_ref[...] = jnp.clip(y, action_low, action_high)


def actor_forward(state, params, action_low=-1.0, action_high=1.0):
    """state: (B, state_size) float32. Returns (B, action_size) float32."""
    w1, b1, w2, b2, w3, b3 = params
    B, S = state.shape
    H1 = w1.shape[1]
    H2 = w2.shape[1]
    A = w3.shape[1]

    # Lane-dense padded feature dims (multiples of 128). Exact because
    # relu(0) = 0 and tanh(0) = 0 feed zero rows into the next (zero-padded) weight.
    H1p = _round_up(H1, 128)
    H2p = _round_up(H2, 128)
    Ap = _round_up(A, 128)

    # Batch tiling: small batches -> single sublane-aligned tile; large batches
    # -> 256-row tiles over a parallel grid (uses both TCs on v7x).
    TB = min(256, _round_up(B, 8))
    Bp = _round_up(B, TB)

    # Pad + cast weights to bf16 (dominant HBM traffic); biases stay f32 (tiny).
    w1p = _pad_to(w1, (S, H1p)).astype(jnp.bfloat16)
    b1p = _pad_to(b1.reshape(1, -1), (1, H1p)).astype(jnp.float32)
    w2p = _pad_to(w2, (H1p, H2p)).astype(jnp.bfloat16)
    b2p = _pad_to(b2.reshape(1, -1), (1, H2p)).astype(jnp.float32)
    w3p = _pad_to(w3, (H2p, Ap)).astype(jnp.bfloat16)
    b3p = _pad_to(b3.reshape(1, -1), (1, Ap)).astype(jnp.float32)
    xp = _pad_to(state, (Bp, S)).astype(jnp.bfloat16)

    grid = (Bp // TB,)

    # Weights/biases: constant index_map -> fetched once, resident across batch tiles.
    resident = lambda shape: pl.BlockSpec(shape, lambda i: (0,) * len(shape))

    flops = 2 * B * (S * H1 + H1 * H2 + H2 * A)
    bytes_accessed = int(
        xp.size * 2 + w1p.size * 2 + w2p.size * 2 + w3p.size * 2
        + (b1p.size + b2p.size + b3p.size) * 4 + Bp * Ap * 4
    )

    kernel = functools.partial(
        _actor_kernel, action_low=float(action_low), action_high=float(action_high)
    )

    out = pl.pallas_call(
        kernel,
        out_shape=jax.ShapeDtypeStruct((Bp, Ap), jnp.float32),
        grid=grid,
        in_specs=[
            pl.BlockSpec((TB, S), lambda i: (i, 0)),   # state tile per grid step
            resident((S, H1p)), resident((1, H1p)),
            resident((H1p, H2p)), resident((1, H2p)),
            resident((H2p, Ap)), resident((1, Ap)),
        ],
        out_specs=pl.BlockSpec((TB, Ap), lambda i: (i, 0)),
        compiler_params=pltpu.CompilerParams(
            dimension_semantics=("parallel",),
        ),
        cost_estimate=pl.CostEstimate(
            flops=flops,
            transcendentals=B * H2,          # tanh
            bytes_accessed=bytes_accessed,
        ),
    )(xp, w1p, b1p, w2p, b2p, w3p, b3p)

    # Slice away batch / action padding.
    return out[:B, :A]


def init_actor_params(key, state_size, action_size):
    """Deterministic init mirroring the PyTorch module:
       - linear1/linear2 weight: fanin_init -> U(-1/sqrt(fan_in), 1/sqrt(fan_in))
       - head weight: U(-0.03, 0.03)
       - all biases: PyTorch default Linear bias init U(-1/sqrt(fan_in), 1/sqrt(fan_in))
       Weights returned as (in, out) = transpose of torch layout."""
    sizes = [state_size, 400, 300, action_size]
    ks = jax.random.split(key, 6)

    def uni(k, shape, bound):
        return jax.random.uniform(k, shape, jnp.float32, -bound, bound)

    f1 = 1.0 / jnp.sqrt(jnp.float32(sizes[0]))
    f2 = 1.0 / jnp.sqrt(jnp.float32(sizes[1]))
    f3 = 1.0 / jnp.sqrt(jnp.float32(sizes[2]))

    w1 = uni(ks[0], (sizes[0], sizes[1]), f1)          # fanin_init
    b1 = uni(ks[1], (sizes[1],), f1)                   # torch default bias init
    w2 = uni(ks[2], (sizes[1], sizes[2]), f2)          # fanin_init
    b2 = uni(ks[3], (sizes[2],), f2)
    w3 = uni(ks[4], (sizes[2], sizes[3]), 3 * 0.01)    # U(-0.03, 0.03)
    b3 = uni(ks[5], (sizes[3],), f3)
    return (w1, b1, w2, b2, w3, b3)


def actor_ref(state, params, action_low=-1.0, action_high=1.0):
    """Pure-JAX f32 reference for verification."""
    w1, b1, w2, b2, w3, b3 = params
    x = jnp.maximum(state @ w1 + b1, 0.0)
    x = jnp.maximum(x @ w2 + b2, 0.0)
    x = jnp.tanh(x) @ w3 + b3
    return jnp.clip(x, action_low, action_high)


if __name__ == "__main__":
    key = jax.random.PRNGKey(0)
    k_param, k_state = jax.random.split(key)

    batch = 2
    state_size = 8
    action_size = 4

    params = init_actor_params(k_param, state_size, action_size)
    state = jax.random.normal(k_state, (batch, state_size), jnp.float32)

    out = actor_forward(state, params)
    out = jax.block_until_ready(out)

    ref = actor_ref(state, params)
    assert out.shape == (batch, action_size), out.shape
    # bf16 weights/activations -> relaxed tolerance vs. the f32 reference.
    assert jnp.allclose(out, ref, atol=2e-2, rtol=2e-2), (out, ref)

    print("KERNEL_OK")
</pallas_src>

<mosaic_0001>
module attributes {stable_mosaic.version = 11 : i64} {
  func.func @_actor_kernel(%arg0: i32, %arg1: memref<8x8xbf16, #tpu.memory_space<vmem>>, %arg2: memref<8x512xbf16, #tpu.memory_space<vmem>>, %arg3: memref<1x512xf32, #tpu.memory_space<vmem>>, %arg4: memref<512x384xbf16, #tpu.memory_space<vmem>>, %arg5: memref<1x384xf32, #tpu.memory_space<vmem>>, %arg6: memref<384x128xbf16, #tpu.memory_space<vmem>>, %arg7: memref<1x128xf32, #tpu.memory_space<vmem>>, %arg8: memref<8x128xf32, #tpu.memory_space<vmem>>) attributes {dimension_semantics = [#tpu.dimension_semantics<parallel>], iteration_bounds = array<i64: 1>, scalar_prefetch = 0 : i64, scratch_operands = 0 : i64, tpu.core_type = #tpu.core_type<tc>, window_params = [{transform_indices = @transform_0, window_bounds = array<i64: 8, 8>}, {pipeline_mode = #tpu.pipeline_mode<synchronous>, transform_indices = @transform_1, window_bounds = array<i64: 8, 512>}, {pipeline_mode = #tpu.pipeline_mode<synchronous>, transform_indices = @transform_2, window_bounds = array<i64: 1, 512>}, {pipeline_mode = #tpu.pipeline_mode<synchronous>, transform_indices = @transform_3, window_bounds = array<i64: 512, 384>}, {pipeline_mode = #tpu.pipeline_mode<synchronous>, transform_indices = @transform_4, window_bounds = array<i64: 1, 384>}, {pipeline_mode = #tpu.pipeline_mode<synchronous>, transform_indices = @transform_5, window_bounds = array<i64: 384, 128>}, {pipeline_mode = #tpu.pipeline_mode<synchronous>, transform_indices = @transform_6, window_bounds = array<i64: 1, 128>}, {transform_indices = @transform_7, window_bounds = array<i64: 8, 128>}]} {
    %c0 = arith.constant 0 : index
    %c0_0 = arith.constant 0 : index
    %0 = vector.load %arg1[%c0, %c0_0] : memref<8x8xbf16, #tpu.memory_space<vmem>>, vector<8x8xbf16>
    %c0_1 = arith.constant 0 : index
    %c0_2 = arith.constant 0 : index
    %1 = vector.load %arg2[%c0_1, %c0_2] : memref<8x512xbf16, #tpu.memory_space<vmem>>, vector<8x512xbf16>
    %cst = arith.constant dense<0.000000e+00> : vector<8x512xf32>
    %2 = tpu.matmul %0, %1, %cst {dimension_numbers = #tpu.dot_dimension_numbers<[1], [0], [0], [1], [0, 0, 1, 1], [], []>} : vector<8x8xbf16>, vector<8x512xbf16>, vector<8x512xf32> -> vector<8x512xf32>
    %c0_3 = arith.constant 0 : index
    %c0_4 = arith.constant 0 : index
    %3 = vector.load %arg3[%c0_3, %c0_4] : memref<1x512xf32, #tpu.memory_space<vmem>>, vector<1x512xf32>
    %4 = vector.broadcast %3 : vector<1x512xf32> to vector<8x512xf32>
    %5 = arith.addf %2, %4 : vector<8x512xf32>
    %cst_5 = arith.constant 0.000000e+00 : f32
    %6 = vector.broadcast %cst_5 : f32 to vector<8x512xf32>
    %7 = arith.maximumf %5, %6 : vector<8x512xf32>
    %8 = arith.truncf %7 : vector<8x512xf32> to vector<8x512xbf16>
    %c0_6 = arith.constant 0 : index
    %c0_7 = arith.constant 0 : index
    %9 = vector.load %arg4[%c0_6, %c0_7] : memref<512x384xbf16, #tpu.memory_space<vmem>>, vector<512x384xbf16>
    %cst_8 = arith.constant dense<0.000000e+00> : vector<8x384xf32>
    %10 = tpu.matmul %8, %9, %cst_8 {dimension_numbers = #tpu.dot_dimension_numbers<[1], [0], [0], [1], [0, 0, 1, 1], [], []>} : vector<8x512xbf16>, vector<512x384xbf16>, vector<8x384xf32> -> vector<8x384xf32>
    %c0_9 = arith.constant 0 : index
    %c0_10 = arith.constant 0 : index
    %11 = vector.load %arg5[%c0_9, %c0_10] : memref<1x384xf32, #tpu.memory_space<vmem>>, vector<1x384xf32>
    %12 = vector.broadcast %11 : vector<1x384xf32> to vector<8x384xf32>
    %13 = arith.addf %10, %12 : vector<8x384xf32>
    %cst_11 = arith.constant 0.000000e+00 : f32
    %14 = vector.broadcast %cst_11 : f32 to vector<8x384xf32>
    %15 = arith.maximumf %13, %14 : vector<8x384xf32>
    %16 = math.tanh %15 : vector<8x384xf32>
    %17 = arith.truncf %16 : vector<8x384xf32> to vector<8x384xbf16>
    %c0_12 = arith.constant 0 : index
    %c0_13 = arith.constant 0 : index
    %18 = vector.load %arg6[%c0_12, %c0_13] : memref<384x128xbf16, #tpu.memory_space<vmem>>, vector<384x128xbf16>
    %cst_14 = arith.constant dense<0.000000e+00> : vector<8x128xf32>
    %19 = tpu.matmul %17, %18, %cst_14 {dimension_numbers = #tpu.dot_dimension_numbers<[1], [0], [0], [1], [0, 0, 1, 1], [], []>} : vector<8x384xbf16>, vector<384x128xbf16>, vector<8x128xf32> -> vector<8x128xf32>
    %c0_15 = arith.constant 0 : index
    %c0_16 = arith.constant 0 : index
    %20 = vector.load %arg7[%c0_15, %c0_16] : memref<1x128xf32, #tpu.memory_space<vmem>>, vector<1x128xf32>
    %21 = vector.broadcast %20 : vector<1x128xf32> to vector<8x128xf32>
    %22 = arith.addf %19, %21 : vector<8x128xf32>
    %cst_17 = arith.constant -1.000000e+00 : f32
    %cst_18 = arith.constant 1.000000e+00 : f32
    %23 = vector.broadcast %cst_17 : f32 to vector<8x128xf32>
    %24 = arith.maximumf %23, %22 : vector<8x128xf32>
    %25 = vector.broadcast %cst_18 : f32 to vector<8x128xf32>
    %26 = arith.minimumf %25, %24 : vector<8x128xf32>
    %c0_19 = arith.constant 0 : index
    %c0_20 = arith.constant 0 : index
    %27 = vector.load %arg8[%c0_19, %c0_20] : memref<8x128xf32, #tpu.memory_space<vmem>>, vector<8x128xf32>
    tpu.vector_store %arg8[%c0_19, %c0_20], %26 {strides = array<i32>} : memref<8x128xf32, #tpu.memory_space<vmem>>, vector<8x128xf32>,
    return
  }
  func.func @transform_0(%arg0: i32) -> (i32, i32) {
    %c0_i32 = arith.constant 0 : i32
    %c0_i32_0 = arith.constant 0 : i32
    return %arg0, %c0_i32 : i32, i32
  }
  func.func @transform_1(%arg0: i32) -> (i32, i32) {
    %c0_i32 = arith.constant 0 : i32
    %c0_i32_0 = arith.constant 0 : i32
    %c0_i32_1 = arith.constant 0 : i32
    return %c0_i32, %c0_i32_0 : i32, i32
  }
  func.func @transform_2(%arg0: i32) -> (i32, i32) {
    %c0_i32 = arith.constant 0 : i32
    %c0_i32_0 = arith.constant 0 : i32
    %c0_i32_1 = arith.constant 0 : i32
    return %c0_i32, %c0_i32_0 : i32, i32
  }
  func.func @transform_3(%arg0: i32) -> (i32, i32) {
    %c0_i32 = arith.constant 0 : i32
    %c0_i32_0 = arith.constant 0 : i32
    %c0_i32_1 = arith.constant 0 : i32
    return %c0_i32, %c0_i32_0 : i32, i32
  }
  func.func @transform_4(%arg0: i32) -> (i32, i32) {
    %c0_i32 = arith.constant 0 : i32
    %c0_i32_0 = arith.constant 0 : i32
    %c0_i32_1 = arith.constant 0 : i32
    return %c0_i32, %c0_i32_0 : i32, i32
  }
  func.func @transform_5(%arg0: i32) -> (i32, i32) {
    %c0_i32 = arith.constant 0 : i32
    %c0_i32_0 = arith.constant 0 : i32
    %c0_i32_1 = arith.constant 0 : i32
    return %c0_i32, %c0_i32_0 : i32, i32
  }
  func.func @transform_6(%arg0: i32) -> (i32, i32) {
    %c0_i32 = arith.constant 0 : i32
    %c0_i32_0 = arith.constant 0 : i32
    %c0_i32_1 = arith.constant 0 : i32
    return %c0_i32, %c0_i32_0 : i32, i32
  }
  func.func @transform_7(%arg0: i32) -> (i32, i32) {
    %c0_i32 = arith.constant 0 : i32
    %c0_i32_0 = arith.constant 0 : i32
    return %arg0, %c0_i32 : i32, i32
  }
}

</mosaic_0001>

<llo_original>
// kernel: tpu_custom_call.1
$region0: #{tpu_custom_call.1}
  #allocation0 [shape = 'u32[]', space=smem, size = 0x4, offset = 0x4, fixed_abs, tag = 'smem constant byte address 0x4 - core index']
  #allocation1 [shape = 'u32[144,128]{1,0:T(1,128)}', space=vmem, size = 0x12000, scoped, tag = 'internal scratch']
  %s0 = inlined_call_operand.hbm [shape: bf16[8,8], index: 0, kind: input, shape index: {}]
  %s1 = inlined_call_operand.hbm [shape: bf16[8,512], index: 1, kind: input, shape index: {}]
  %s2 = inlined_call_operand.hbm [shape: f32[1,512], index: 2, kind: input, shape index: {}]
  %s3 = inlined_call_operand.hbm [shape: bf16[512,384], index: 3, kind: input, shape index: {}]
  %s4 = inlined_call_operand.vmem [shape: f32[1,384], index: 4, kind: input, shape index: {}]
  %s5 = inlined_call_operand.hbm [shape: bf16[384,128], index: 5, kind: input, shape index: {}]
  %s6 = inlined_call_operand.vmem [shape: f32[1,128], index: 6, kind: input, shape index: {}]
  %s7 = inlined_call_operand.hbm [shape: f32[8,128], index: 7, kind: output, shape index: {}]
  %s8 = sld [smem:[#allocation0]]
  $region58: #{tpu_custom_call.1} parent=0
    _
  %s10 = ssub.s32 1, %s8
  %s11 = scalar_select 0, %s10, %s8
  $region1: #{tpu_custom_call.1} parent=0
    #allocation2 [shape = 'u8[2048]{0}', space=vmem, size = 0x800, scoped, tag = 'input window, operand 0, single buffered']
    #allocation3 [shape = 's32[1]{0}', space=sflag, size = 0x4, scoped, tag = 'scoped memory for tpu_custom_call.1']
    #allocation4 [shape = 's32[1]{0}', space=sflag, size = 0x4, scoped, tag = 'scoped memory for tpu_custom_call.1']
    #allocation5 [shape = 'u8[8192]{0}', space=vmem, size = 0x2000, scoped, tag = 'input window, operand 1, single buffered']
    #allocation6 [shape = 's32[1]{0}', space=sflag, size = 0x4, scoped, tag = 'scoped memory for tpu_custom_call.1']
    #allocation7 [shape = 'u8[2048]{0}', space=vmem, size = 0x800, scoped, tag = 'input window, operand 2, single buffered']
    #allocation8 [shape = 'u8[393216]{0}', space=vmem, size = 0x60000, scoped, tag = 'input window, operand 3, single buffered']
    #allocation9 [shape = 's32[1]{0}', space=sflag, size = 0x4, scoped, tag = 'scoped memory for tpu_custom_call.1']
    #allocation10 [shape = 'u8[98304]{0}', space=vmem, size = 0x18000, scoped, tag = 'input window, operand 5, single buffered']
    #allocation11 [shape = 'u8[4096]{0}', space=vmem, size = 0x1000, scoped, tag = 'output window, operand 0, single buffered']
    %12 = vsyncpa [#allocation3], 0
    %13 = vsyncpa [#allocation6], 0
    %14 = vsyncpa [#allocation9], 0
    %15 = vsyncpa [#allocation4], 0
    // Predicated region
    $region2: #{tpu_custom_call.1} parent=1 // pred_check
      _
    $region3: #{tpu_custom_call.1} parent=1 // pred_check_branch
      %17 = sbr.rel (0) target = $region5
    $region4: #{tpu_custom_call.1} parent=1 // pred_region
      %s19 = ssub.s32 64, 64
      %20 = vsyncadd [#allocation3], %s19
      %s22 = sshll.u32 [#allocation2], 4
      %s23 = int_to_ptr.vmem [resolvable:$true] %s22
      %25 = dma.hbm_to_vmem [thread:$0]  %s0, 64, %s23, [#allocation3]
    $region5: #{tpu_custom_call.1} parent=1 // pred_fallthru
      _
    // Predicated region
    $region6: #{tpu_custom_call.1} parent=1 // pred_check
      _
    $region7: #{tpu_custom_call.1} parent=1 // pred_check_branch
      %27 = sbr.rel (0) target = $region9
    $region8: #{tpu_custom_call.1} parent=1 // pred_region
      %s29 = ssub.s32 256, 256
      %30 = vsyncadd [#allocation6], %s29
      %s32 = sshll.u32 [#allocation5], 4
      %s33 = int_to_ptr.vmem [resolvable:$true] %s32
      %35 = dma.hbm_to_vmem [thread:$0]  %s1, 256, %s33, [#allocation6]
    $region9: #{tpu_custom_call.1} parent=1 // pred_fallthru
      _
    // Predicated region
    $region10: #{tpu_custom_call.1} parent=1 // pred_check
      _
    $region11: #{tpu_custom_call.1} parent=1 // pred_check_branch
      %37 = sbr.rel (0) target = $region13
    $region12: #{tpu_custom_call.1} parent=1 // pred_region
      %s39 = ssub.s32 64, 64
      %40 = vsyncadd [#allocation6], %s39
      %s42 = sshll.u32 [#allocation7], 4
      %s43 = int_to_ptr.vmem [resolvable:$true] %s42
      %45 = dma.hbm_to_vmem [thread:$0]  %s2, 64, %s43, [#allocation6]
    $region13: #{tpu_custom_call.1} parent=1 // pred_fallthru
      _
    // Predicated region
    $region14: #{tpu_custom_call.1} parent=1 // pred_check
      _
    $region15: #{tpu_custom_call.1} parent=1 // pred_check_branch
      %47 = sbr.rel (0) target = $region17
    $region16: #{tpu_custom_call.1} parent=1 // pred_region
      %s49 = ssub.s32 12288, 12288
      %50 = vsyncadd [#allocation9], %s49
      %s51 = sshll.u32 [#allocation8], 4
      %s52 = int_to_ptr.vmem [resolvable:$true] %s51
      %57 = dma.hbm_to_vmem [thread:$0]  %s3, 12288, %s52, [#allocation9], 192, 192, 12
    $region17: #{tpu_custom_call.1} parent=1 // pred_fallthru
      _
    // Predicated region
    $region18: #{tpu_custom_call.1} parent=1 // pred_check
      _
    $region19: #{tpu_custom_call.1} parent=1 // pred_check_branch
      %59 = sbr.rel (0) target = $region21
    $region20: #{tpu_custom_call.1} parent=1 // pred_region
      _
    $region21: #{tpu_custom_call.1} parent=1 // pred_fallthru
      _
    // Predicated region
    $region22: #{tpu_custom_call.1} parent=1 // pred_check
      _
    $region23: #{tpu_custom_call.1} parent=1 // pred_check_branch
      %61 = sbr.rel (0) target = $region25
    $region24: #{tpu_custom_call.1} parent=1 // pred_region
      %s63 = ssub.s32 3072, 3072
      %64 = vsyncadd [#allocation9], %s63
      %s65 = sshll.u32 [#allocation10], 4
      %s66 = int_to_ptr.vmem [resolvable:$true] %s65
      %71 = dma.hbm_to_vmem [thread:$0]  %s5, 3072, %s66, [#allocation9], 64, 64, 4
    $region25: #{tpu_custom_call.1} parent=1 // pred_fallthru
      _
    // Predicated region
    $region26: #{tpu_custom_call.1} parent=1 // pred_check
      _
    $region27: #{tpu_custom_call.1} parent=1 // pred_check_branch
      %73 = sbr.rel (0) target = $region29
    $region28: #{tpu_custom_call.1} parent=1 // pred_region
      _
    $region29: #{tpu_custom_call.1} parent=1 // pred_fallthru
      _
    // Predicated region
    $region30: #{tpu_custom_call.1} parent=1 // pred_check
      _
    $region31: #{tpu_custom_call.1} parent=1 // pred_check_branch
      %75 = sbr.rel (0) target = $region33
    $region32: #{tpu_custom_call.1} parent=1 // pred_region
      %76 = dma.done [#allocation3], 64
    $region33: #{tpu_custom_call.1} parent=1 // pred_fallthru
      _
    // Predicated region
    $region34: #{tpu_custom_call.1} parent=1 // pred_check
      _
    $region35: #{tpu_custom_call.1} parent=1 // pred_check_branch
      %78 = sbr.rel (0) target = $region37
    $region36: #{tpu_custom_call.1} parent=1 // pred_region
      %79 = dma.done [#allocation6], 256
    $region37: #{tpu_custom_call.1} parent=1 // pred_fallthru
      _
    // Predicated region
    $region38: #{tpu_custom_call.1} parent=1 // pred_check
      _
    $region39: #{tpu_custom_call.1} parent=1 // pred_check_branch
      %81 = sbr.rel (0) target = $region41
    $region40: #{tpu_custom_call.1} parent=1 // pred_region
      %82 = dma.done [#allocation6], 64
    $region41: #{tpu_custom_call.1} parent=1 // pred_fallthru
      _
    // Predicated region
    $region42: #{tpu_custom_call.1} parent=1 // pred_check
      _
    $region43: #{tpu_custom_call.1} parent=1 // pred_check_branch
      %84 = sbr.rel (0) target = $region45
    $region44: #{tpu_custom_call.1} parent=1 // pred_region
      %85 = dma.done [#allocation9], 12288
    $region45: #{tpu_custom_call.1} parent=1 // pred_fallthru
      _
    // Predicated region
    $region46: #{tpu_custom_call.1} parent=1 // pred_check
      _
    $region47: #{tpu_custom_call.1} parent=1 // pred_check_branch
      %87 = sbr.rel (0) target = $region49
    $region48: #{tpu_custom_call.1} parent=1 // pred_region
      %88 = dma.done [#allocation9], 3072
    $region49: #{tpu_custom_call.1} parent=1 // pred_fallthru
      _
    %v90 = vld [vmem:[#allocation2] sm:$0xf]
    %v91 = vld [vmem:[#allocation5] sm:$0xff]
    %v92 = vld [vmem:[#allocation5 + $0x8] sm:$0xff]
    %v93 = vld [vmem:[#allocation7] sm:$0xf]
    %v95 = vlaneseq
    %v96 = vshrl.u32 %v95, 7
    %v97 = vsub.s32 0, %v96
    %v98 = vrot.slane %v93, %v97
    %v99 = vlaneseq
    %v100 = vshrl.u32 %v99, 7
    %v101 = vsub.s32 1, %v100
    %v102 = vrot.slane %v93, %v101
    %v103 = vlaneseq
    %v104 = vshrl.u32 %v103, 7
    %v105 = vsub.s32 2, %v104
    %v106 = vrot.slane %v93, %v105
    %v107 = vlaneseq
    %v108 = vshrl.u32 %v107, 7
    %v109 = vsub.s32 3, %v108
    %v110 = vrot.slane %v93, %v109
    %v117 = vunpack.c.l.b16 %v91
    %v118 = vunpack.c.h.b16 %v91
    %v119 = vunpack.c.l.b16 %v92
    %v120 = vunpack.c.h.b16 %v92
    %v121 = vpack.c.b16 %v117, %v117
    %v122 = vpack.c.b16 %v118, %v118
    %v123 = vpack.c.b16 %v119, %v119
    %v124 = vpack.c.b16 %v120, %v120
    %vm125 = vcmask 64512
    %v127 = vsel %vm125, %v90, 0
    %vm129 = vcmask 1043456
    %v131 = vsel %vm129, %v121, 0
    %v134 = vsel %vm129, %v122, 0
    %v137 = vsel %vm129, %v123, 0
    %v140 = vsel %vm129, %v124, 0
    %142 = vmatprep.subr.bf16.mxu0 0
    %143 = vmatpush1.bf16.msra.mxu0 0
    %144 = vmatprep.subr.bf16.mxu0 0
    %145 = vmatpush1.bf16.msra.mxu0 0
    %146 = vmatprep.subr.bf16.mxu0 0
    %147 = vmatpush1.bf16.msra.mxu0 0
    %148 = vmatprep.subr.bf16.mxu0 0
    %149 = vmatpush1.bf16.msra.mxu0 0
    %150 = vmatprep.subr.bf16.mxu0 0
    %151 = vmatpush1.bf16.msra.mxu0 0
    %152 = vmatprep.subr.bf16.mxu0 0
    %153 = vmatpush1.bf16.msra.mxu0 0
    %154 = vmatprep.subr.bf16.mxu0 0
    %155 = vmatpush1.bf16.msra.mxu0 0
    %156 = vmatprep.subr.bf16.mxu0 %v134
    %157 = vmatpush1.bf16.msra.mxu0 %v131
    %158 = vmatprep.subr.bf16.mxu0 0
    %159 = vmatpush2.bf16.msra.mxu0 0
    %160 = vmatprep.subr.bf16.mxu0 0
    %161 = vmatpush2.bf16.msra.mxu0 0
    %162 = vmatprep.subr.bf16.mxu0 0
    %163 = vmatpush2.bf16.msra.mxu0 0
    %164 = vmatprep.subr.bf16.mxu0 0
    %165 = vmatpush2.bf16.msra.mxu0 0
    %166 = vmatprep.subr.bf16.mxu0 0
    %167 = vmatpush2.bf16.msra.mxu0 0
    %168 = vmatprep.subr.bf16.mxu0 0
    %169 = vmatpush2.bf16.msra.mxu0 0
    %170 = vmatprep.subr.bf16.mxu0 0
    %171 = vmatpush2.bf16.msra.mxu0 0
    %172 = vmatprep.subr.bf16.mxu0 0
    %173 = vmatpush2.bf16.msra.mxu0 0
    %174 = vmatprep.mubr.bf16.mxu0 0
    %175 = vmatmul.mubr.bf16.gmra.mxu0 %v127
    %v176 = vpop.f32.mrf.mxu0
    %v177 = vadd.f32 %v98, %v176
    %v178 = vpop.f32.mrf.mxu0
    %v179 = vadd.f32 %v102, %v178
    %v180 = vpop.f32.mrf.mxu0
    %v181 = vpop.f32.mrf.mxu0
    %182 = vdwg.mxu0
    %183 = vmatprep.subr.bf16.mxu0 0
    %184 = vmatpush1.bf16.msra.mxu0 0
    %185 = vmatprep.subr.bf16.mxu0 0
    %186 = vmatpush1.bf16.msra.mxu0 0
    %187 = vmatprep.subr.bf16.mxu0 0
    %188 = vmatpush1.bf16.msra.mxu0 0
    %189 = vmatprep.subr.bf16.mxu0 0
    %190 = vmatpush1.bf16.msra.mxu0 0
    %191 = vmatprep.subr.bf16.mxu0 0
    %192 = vmatpush1.bf16.msra.mxu0 0
    %193 = vmatprep.subr.bf16.mxu0 0
    %194 = vmatpush1.bf16.msra.mxu0 0
    %195 = vmatprep.subr.bf16.mxu0 0
    %196 = vmatpush1.bf16.msra.mxu0 0
    %197 = vmatprep.subr.bf16.mxu0 %v140
    %198 = vmatpush1.bf16.msra.mxu0 %v137
    %199 = vmatprep.subr.bf16.mxu0 0
    %200 = vmatpush2.bf16.msra.mxu0 0
    %201 = vmatprep.subr.bf16.mxu0 0
    %202 = vmatpush2.bf16.msra.mxu0 0
    %203 = vmatprep.subr.bf16.mxu0 0
    %204 = vmatpush2.bf16.msra.mxu0 0
    %205 = vmatprep.subr.bf16.mxu0 0
    %206 = vmatpush2.bf16.msra.mxu0 0
    %207 = vmatprep.subr.bf16.mxu0 0
    %208 = vmatpush2.bf16.msra.mxu0 0
    %209 = vmatprep.subr.bf16.mxu0 0
    %210 = vmatpush2.bf16.msra.mxu0 0
    %211 = vmatprep.subr.bf16.mxu0 0
    %212 = vmatpush2.bf16.msra.mxu0 0
    %213 = vmatprep.subr.bf16.mxu0 0
    %214 = vmatpush2.bf16.msra.mxu0 0
    %215 = vmatprep.mubr.bf16.mxu0 0
    %216 = vmatmul.mubr.bf16.gmra.mxu0 %v127
    %v217 = vpop.f32.mrf.mxu0
    %v218 = vadd.f32 %v106, %v217
    %v219 = vpop.f32.mrf.mxu0
    %v220 = vadd.f32 %v110, %v219
    %v221 = vpop.f32.mrf.mxu0
    %v222 = vpop.f32.mrf.mxu0
    %223 = vdwg.mxu0
    %v224 = vmax.f32 %v177, 0.0
    %v225 = vmax.f32 %v179, 0.0
    %v226 = vmax.f32 %v218, 0.0
    %v227 = vmax.f32 %v220, 0.0
    %v228 = vpack.c.bf16 %v224, %v224
    %v229 = vpack.c.bf16 %v225, %v225
    %v230 = vpack.c.bf16 %v226, %v226
    %v231 = vpack.c.bf16 %v227, %v227
    %v232 = vld [vmem:[#allocation8] sm:$0xff]
    %v233 = vld [vmem:[#allocation8 + $0x8] sm:$0xf]
    %v234 = vld [vmem:[#allocation8 + $0xc] sm:$0xff]
    %v235 = vld [vmem:[#allocation8 + $0x14] sm:$0xf]
    %v236 = vld [vmem:[#allocation8 + $0x18] sm:$0xff]
    %v237 = vld [vmem:[#allocation8 + $0x20] sm:$0xf]
    %v238 = vld [vmem:[#allocation8 + $0x24] sm:$0xff]
    %v239 = vld [vmem:[#allocation8 + $0x2c] sm:$0xf]
    %v240 = vld [vmem:[#allocation8 + $0x30] sm:$0xff]
    %v241 = vld [vmem:[#allocation8 + $0x38] sm:$0xf]
    %v242 = vld [vmem:[#allocation8 + $0x3c] sm:$0xff]
    %v243 = vld [vmem:[#allocation8 + $0x44] sm:$0xf]
    %v244 = vld [vmem:[#allocation8 + $0x48] sm:$0xff]
    %v245 = vld [vmem:[#allocation8 + $0x50] sm:$0xf]
    %v246 = vld [vmem:[#allocation8 + $0x54] sm:$0xff]
    %v247 = vld [vmem:[#allocation8 + $0x5c] sm:$0xf]
    %v248 = vld [vmem:[#allocation8 + $0x60] sm:$0xff]
    %v249 = vld [vmem:[#allocation8 + $0x68] sm:$0xf]
    %v250 = vld [vmem:[#allocation8 + $0x6c] sm:$0xff]
    %v251 = vld [vmem:[#allocation8 + $0x74] sm:$0xf]
    %v252 = vld [vmem:[#allocation8 + $0x78] sm:$0xff]
    %v253 = vld [vmem:[#allocation8 + $0x80] sm:$0xf]
    %v254 = vld [vmem:[#allocation8 + $0x84] sm:$0xff]
    %v255 = vld [vmem:[#allocation8 + $0x8c] sm:$0xf]
    %v256 = vld [vmem:[#allocation8 + $0x90] sm:$0xff]
    %v257 = vld [vmem:[#allocation8 + $0x98] sm:$0xf]
    %v258 = vld [vmem:[#allocation8 + $0x9c] sm:$0xff]
    %v259 = vld [vmem:[#allocation8 + $0xa4] sm:$0xf]
    %v260 = vld [vmem:[#allocation8 + $0xa8] sm:$0xff]
    %v261 = vld [vmem:[#allocation8 + $0xb0] sm:$0xf]
    %v262 = vld [vmem:[#allocation8 + $0xb4] sm:$0xff]
    %v263 = vld [vmem:[#allocation8 + $0xbc] sm:$0xf]
    %v264 = vld [vmem:[#allocation8 + $0xc0] sm:$0xff]
    %v265 = vld [vmem:[#allocation8 + $0xc8] sm:$0xf]
    %v266 = vld [vmem:[#allocation8 + $0xcc] sm:$0xff]
    %v267 = vld [vmem:[#allocation8 + $0xd4] sm:$0xf]
    %v268 = vld [vmem:[#allocation8 + $0xd8] sm:$0xff]
    %v269 = vld [vmem:[#allocation8 + $0xe0] sm:$0xf]
    %v270 = vld [vmem:[#allocation8 + $0xe4] sm:$0xff]
    %v271 = vld [vmem:[#allocation8 + $0xec] sm:$0xf]
    %v272 = vld [vmem:[#allocation8 + $0xf0] sm:$0xff]
    %v273 = vld [vmem:[#allocation8 + $0xf8] sm:$0xf]
    %v274 = vld [vmem:[#allocation8 + $0xfc] sm:$0xff]
    %v275 = vld [vmem:[#allocation8 + $0x104] sm:$0xf]
    %v276 = vld [vmem:[#allocation8 + $0x108] sm:$0xff]
    %v277 = vld [vmem:[#allocation8 + $0x110] sm:$0xf]
    %v278 = vld [vmem:[#allocation8 + $0x114] sm:$0xff]
    %v279 = vld [vmem:[#allocation8 + $0x11c] sm:$0xf]
    %v280 = vld [vmem:[#allocation8 + $0x120] sm:$0xff]
    %v281 = vld [vmem:[#allocation8 + $0x128] sm:$0xf]
    %v282 = vld [vmem:[#allocation8 + $0x12c] sm:$0xff]
    %v283 = vld [vmem:[#allocation8 + $0x134] sm:$0xf]
    %v284 = vld [vmem:[#allocation8 + $0x138] sm:$0xff]
    %v285 = vld [vmem:[#allocation8 + $0x140] sm:$0xf]
    %v286 = vld [vmem:[#allocation8 + $0x144] sm:$0xff]
    %v287 = vld [vmem:[#allocation8 + $0x14c] sm:$0xf]
    %v288 = vld [vmem:[#allocation8 + $0x150] sm:$0xff]
    %v289 = vld [vmem:[#allocation8 + $0x158] sm:$0xf]
    %v290 = vld [vmem:[#allocation8 + $0x15c] sm:$0xff]
    %v291 = vld [vmem:[#allocation8 + $0x164] sm:$0xf]
    %v292 = vld [vmem:[#allocation8 + $0x168] sm:$0xff]
    %v293 = vld [vmem:[#allocation8 + $0x170] sm:$0xf]
    %v294 = vld [vmem:[#allocation8 + $0x174] sm:$0xff]
    %v295 = vld [vmem:[#allocation8 + $0x17c] sm:$0xf]
    %v296 = vld [vmem:[#allocation8 + $0x180] sm:$0xff]
    %v297 = vld [vmem:[#allocation8 + $0x188] sm:$0xf]
    %v298 = vld [vmem:[#allocation8 + $0x18c] sm:$0xff]
    %v299 = vld [vmem:[#allocation8 + $0x194] sm:$0xf]
    %v300 = vld [vmem:[#allocation8 + $0x198] sm:$0xff]
    %v301 = vld [vmem:[#allocation8 + $0x1a0] sm:$0xf]
    %v302 = vld [vmem:[#allocation8 + $0x1a4] sm:$0xff]
    %v303 = vld [vmem:[#allocation8 + $0x1ac] sm:$0xf]
    %v304 = vld [vmem:[#allocation8 + $0x1b0] sm:$0xff]
    %v305 = vld [vmem:[#allocation8 + $0x1b8] sm:$0xf]
    %v306 = vld [vmem:[#allocation8 + $0x1bc] sm:$0xff]
    %v307 = vld [vmem:[#allocation8 + $0x1c4] sm:$0xf]
    %v308 = vld [vmem:[#allocation8 + $0x1c8] sm:$0xff]
    %v309 = vld [vmem:[#allocation8 + $0x1d0] sm:$0xf]
    %v310 = vld [vmem:[#allocation8 + $0x1d4] sm:$0xff]
    %v311 = vld [vmem:[#allocation8 + $0x1dc] sm:$0xf]
    %v312 = vld [vmem:[#allocation8 + $0x1e0] sm:$0xff]
    %v313 = vld [vmem:[#allocation8 + $0x1e8] sm:$0xf]
    %v314 = vld [vmem:[#allocation8 + $0x1ec] sm:$0xff]
    %v315 = vld [vmem:[#allocation8 + $0x1f4] sm:$0xf]
    %v316 = vld [vmem:[#allocation8 + $0x1f8] sm:$0xff]
    %v317 = vld [vmem:[#allocation8 + $0x200] sm:$0xf]
    %v318 = vld [vmem:[#allocation8 + $0x204] sm:$0xff]
    %v319 = vld [vmem:[#allocation8 + $0x20c] sm:$0xf]
    %v320 = vld [vmem:[#allocation8 + $0x210] sm:$0xff]
    %v321 = vld [vmem:[#allocation8 + $0x218] sm:$0xf]
    %v322 = vld [vmem:[#allocation8 + $0x21c] sm:$0xff]
    %v323 = vld [vmem:[#allocation8 + $0x224] sm:$0xf]
    %v324 = vld [vmem:[#allocation8 + $0x228] sm:$0xff]
    %v325 = vld [vmem:[#allocation8 + $0x230] sm:$0xf]
    %v326 = vld [vmem:[#allocation8 + $0x234] sm:$0xff]
    %v327 = vld [vmem:[#allocation8 + $0x23c] sm:$0xf]
    %v328 = vld [vmem:[#allocation8 + $0x240] sm:$0xff]
    %v329 = vld [vmem:[#allocation8 + $0x248] sm:$0xf]
    %v330 = vld [vmem:[#allocation8 + $0x24c] sm:$0xff]
    %v331 = vld [vmem:[#allocation8 + $0x254] sm:$0xf]
    %v332 = vld [vmem:[#allocation8 + $0x258] sm:$0xff]
    %v333 = vld [vmem:[#allocation8 + $0x260] sm:$0xf]
    %v334 = vld [vmem:[#allocation8 + $0x264] sm:$0xff]
    %v335 = vld [vmem:[#allocation8 + $0x26c] sm:$0xf]
    %v336 = vld [vmem:[#allocation8 + $0x270] sm:$0xff]
    %v337 = vld [vmem:[#allocation8 + $0x278] sm:$0xf]
    %v338 = vld [vmem:[#allocation8 + $0x27c] sm:$0xff]
    %v339 = vld [vmem:[#allocation8 + $0x284] sm:$0xf]
    %v340 = vld [vmem:[#allocation8 + $0x288] sm:$0xff]
    %v341 = vld [vmem:[#allocation8 + $0x290] sm:$0xf]
    %v342 = vld [vmem:[#allocation8 + $0x294] sm:$0xff]
    %v343 = vld [vmem:[#allocation8 + $0x29c] sm:$0xf]
    %v344 = vld [vmem:[#allocation8 + $0x2a0] sm:$0xff]
    %v345 = vld [vmem:[#allocation8 + $0x2a8] sm:$0xf]
    %v346 = vld [vmem:[#allocation8 + $0x2ac] sm:$0xff]
    %v347 = vld [vmem:[#allocation8 + $0x2b4] sm:$0xf]
    %v348 = vld [vmem:[#allocation8 + $0x2b8] sm:$0xff]
    %v349 = vld [vmem:[#allocation8 + $0x2c0] sm:$0xf]
    %v350 = vld [vmem:[#allocation8 + $0x2c4] sm:$0xff]
    %v351 = vld [vmem:[#allocation8 + $0x2cc] sm:$0xf]
    %v352 = vld [vmem:[#allocation8 + $0x2d0] sm:$0xff]
    %v353 = vld [vmem:[#allocation8 + $0x2d8] sm:$0xf]
    %v354 = vld [vmem:[#allocation8 + $0x2dc] sm:$0xff]
    %v355 = vld [vmem:[#allocation8 + $0x2e4] sm:$0xf]
    %v356 = vld [vmem:[#allocation8 + $0x2e8] sm:$0xff]
    %v357 = vld [vmem:[#allocation8 + $0x2f0] sm:$0xf]
    %v358 = vld [vmem:[#allocation8 + $0x2f4] sm:$0xff]
    %v359 = vld [vmem:[#allocation8 + $0x2fc] sm:$0xf]
    %v360 = vld [vmem:[%s4] sm:$0x7]
    %v362 = vlaneseq
    %v363 = vshrl.u32 %v362, 7
    %v364 = vsub.s32 0, %v363
    %v365 = vrot.slane %v360, %v364
    %v366 = vlaneseq
    %v367 = vshrl.u32 %v366, 7
    %v368 = vsub.s32 1, %v367
    %v369 = vrot.slane %v360, %v368
    %v370 = vlaneseq
    %v371 = vshrl.u32 %v370, 7
    %v372 = vsub.s32 2, %v371
    %v373 = vrot.slane %v360, %v372
    %v505 = vunpack.c.l.b16 %v232
    %v506 = vunpack.c.h.b16 %v232
    %v507 = vunpack.c.l.b16 %v233
    %v508 = vunpack.c.l.b16 %v234
    %v509 = vunpack.c.h.b16 %v234
    %v510 = vunpack.c.l.b16 %v235
    %v511 = vunpack.c.l.b16 %v236
    %v512 = vunpack.c.h.b16 %v236
    %v513 = vunpack.c.l.b16 %v237
    %v514 = vunpack.c.l.b16 %v238
    %v515 = vunpack.c.h.b16 %v238
    %v516 = vunpack.c.l.b16 %v239
    %v517 = vunpack.c.l.b16 %v240
    %v518 = vunpack.c.h.b16 %v240
    %v519 = vunpack.c.l.b16 %v241
    %v520 = vunpack.c.l.b16 %v242
    %v521 = vunpack.c.h.b16 %v242
    %v522 = vunpack.c.l.b16 %v243
    %v523 = vunpack.c.l.b16 %v244
    %v524 = vunpack.c.h.b16 %v244
    %v525 = vunpack.c.l.b16 %v245
    %v526 = vunpack.c.l.b16 %v246
    %v527 = vunpack.c.h.b16 %v246
    %v528 = vunpack.c.l.b16 %v247
    %v529 = vunpack.c.l.b16 %v248
    %v530 = vunpack.c.h.b16 %v248
    %v531 = vunpack.c.l.b16 %v249
    %v532 = vunpack.c.l.b16 %v250
    %v533 = vunpack.c.h.b16 %v250
    %v534 = vunpack.c.l.b16 %v251
    %v535 = vunpack.c.l.b16 %v252
    %v536 = vunpack.c.h.b16 %v252
    %v537 = vunpack.c.l.b16 %v253
    %v538 = vunpack.c.l.b16 %v254
    %v539 = vunpack.c.h.b16 %v254
    %v540 = vunpack.c.l.b16 %v255
    %v541 = vunpack.c.l.b16 %v256
    %v542 = vunpack.c.h.b16 %v256
    %v543 = vunpack.c.l.b16 %v257
    %v544 = vunpack.c.l.b16 %v258
    %v545 = vunpack.c.h.b16 %v258
    %v546 = vunpack.c.l.b16 %v259
    %v547 = vunpack.c.l.b16 %v260
    %v548 = vunpack.c.h.b16 %v260
    %v549 = vunpack.c.l.b16 %v261
    %v550 = vunpack.c.l.b16 %v262
    %v551 = vunpack.c.h.b16 %v262
    %v552 = vunpack.c.l.b16 %v263
    %v553 = vunpack.c.l.b16 %v264
    %v554 = vunpack.c.h.b16 %v264
    %v555 = vunpack.c.l.b16 %v265
    %v556 = vunpack.c.l.b16 %v266
    %v557 = vunpack.c.h.b16 %v266
    %v558 = vunpack.c.l.b16 %v267
    %v559 = vunpack.c.l.b16 %v268
    %v560 = vunpack.c.h.b16 %v268
    %v561 = vunpack.c.l.b16 %v269
    %v562 = vunpack.c.l.b16 %v270
    %v563 = vunpack.c.h.b16 %v270
    %v564 = vunpack.c.l.b16 %v271
    %v565 = vunpack.c.l.b16 %v272
    %v566 = vunpack.c.h.b16 %v272
    %v567 = vunpack.c.l.b16 %v273
    %v568 = vunpack.c.l.b16 %v274
    %v569 = vunpack.c.h.b16 %v274
    %v570 = vunpack.c.l.b16 %v275
    %v571 = vunpack.c.l.b16 %v276
    %v572 = vunpack.c.h.b16 %v276
    %v573 = vunpack.c.l.b16 %v277
    %v574 = vunpack.c.l.b16 %v278
    %v575 = vunpack.c.h.b16 %v278
    %v576 = vunpack.c.l.b16 %v279
    %v577 = vunpack.c.l.b16 %v280
    %v578 = vunpack.c.h.b16 %v280
    %v579 = vunpack.c.l.b16 %v281
    %v580 = vunpack.c.l.b16 %v282
    %v581 = vunpack.c.h.b16 %v282
    %v582 = vunpack.c.l.b16 %v283
    %v583 = vunpack.c.l.b16 %v284
    %v584 = vunpack.c.h.b16 %v284
    %v585 = vunpack.c.l.b16 %v285
    %v586 = vunpack.c.l.b16 %v286
    %v587 = vunpack.c.h.b16 %v286
    %v588 = vunpack.c.l.b16 %v287
    %v589 = vunpack.c.l.b16 %v288
    %v590 = vunpack.c.h.b16 %v288
    %v591 = vunpack.c.l.b16 %v289
    %v592 = vunpack.c.l.b16 %v290
    %v593 = vunpack.c.h.b16 %v290
    %v594 = vunpack.c.l.b16 %v291
    %v595 = vunpack.c.l.b16 %v292
    %v596 = vunpack.c.h.b16 %v292
    %v597 = vunpack.c.l.b16 %v293
    %v598 = vunpack.c.l.b16 %v294
    %v599 = vunpack.c.h.b16 %v294
    %v600 = vunpack.c.l.b16 %v295
    %v601 = vunpack.c.l.b16 %v296
    %v602 = vunpack.c.h.b16 %v296
    %v603 = vunpack.c.l.b16 %v297
    %v604 = vunpack.c.l.b16 %v298
    %v605 = vunpack.c.h.b16 %v298
    %v606 = vunpack.c.l.b16 %v299
    %v607 = vunpack.c.l.b16 %v300
    %v608 = vunpack.c.h.b16 %v300
    %v609 = vunpack.c.l.b16 %v301
    %v610 = vunpack.c.l.b16 %v302
    %v611 = vunpack.c.h.b16 %v302
    %v612 = vunpack.c.l.b16 %v303
    %v613 = vunpack.c.l.b16 %v304
    %v614 = vunpack.c.h.b16 %v304
    %v615 = vunpack.c.l.b16 %v305
    %v616 = vunpack.c.l.b16 %v306
    %v617 = vunpack.c.h.b16 %v306
    %v618 = vunpack.c.l.b16 %v307
    %v619 = vunpack.c.l.b16 %v308
    %v620 = vunpack.c.h.b16 %v308
    %v621 = vunpack.c.l.b16 %v309
    %v622 = vunpack.c.l.b16 %v310
    %v623 = vunpack.c.h.b16 %v310
    %v624 = vunpack.c.l.b16 %v311
    %v625 = vunpack.c.l.b16 %v312
    %v626 = vunpack.c.h.b16 %v312
    %v627 = vunpack.c.l.b16 %v313
    %v628 = vunpack.c.l.b16 %v314
    %v629 = vunpack.c.h.b16 %v314
    %v630 = vunpack.c.l.b16 %v315
    %v631 = vunpack.c.l.b16 %v316
    %v632 = vunpack.c.h.b16 %v316
    %v633 = vunpack.c.l.b16 %v317
    %v634 = vunpack.c.l.b16 %v318
    %v635 = vunpack.c.h.b16 %v318
    %v636 = vunpack.c.l.b16 %v319
    %v637 = vunpack.c.l.b16 %v320
    %v638 = vunpack.c.h.b16 %v320
    %v639 = vunpack.c.l.b16 %v321
    %v640 = vunpack.c.l.b16 %v322
    %v641 = vunpack.c.h.b16 %v322
    %v642 = vunpack.c.l.b16 %v323
    %v643 = vunpack.c.l.b16 %v324
    %v644 = vunpack.c.h.b16 %v324
    %v645 = vunpack.c.l.b16 %v325
    %v646 = vunpack.c.l.b16 %v326
    %v647 = vunpack.c.h.b16 %v326
    %v648 = vunpack.c.l.b16 %v327
    %v649 = vunpack.c.l.b16 %v328
    %v650 = vunpack.c.h.b16 %v328
    %v651 = vunpack.c.l.b16 %v329
    %v652 = vunpack.c.l.b16 %v330
    %v653 = vunpack.c.h.b16 %v330
    %v654 = vunpack.c.l.b16 %v331
    %v655 = vunpack.c.l.b16 %v332
    %v656 = vunpack.c.h.b16 %v332
    %v657 = vunpack.c.l.b16 %v333
    %v658 = vunpack.c.l.b16 %v334
    %v659 = vunpack.c.h.b16 %v334
    %v660 = vunpack.c.l.b16 %v335
    %v661 = vunpack.c.l.b16 %v336
    %v662 = vunpack.c.h.b16 %v336
    %v663 = vunpack.c.l.b16 %v337
    %v664 = vunpack.c.l.b16 %v338
    %v665 = vunpack.c.h.b16 %v338
    %v666 = vunpack.c.l.b16 %v339
    %v667 = vunpack.c.l.b16 %v340
    %v668 = vunpack.c.h.b16 %v340
    %v669 = vunpack.c.l.b16 %v341
    %v670 = vunpack.c.l.b16 %v342
    %v671 = vunpack.c.h.b16 %v342
    %v672 = vunpack.c.l.b16 %v343
    %v673 = vunpack.c.l.b16 %v344
    %v674 = vunpack.c.h.b16 %v344
    %v675 = vunpack.c.l.b16 %v345
    %v676 = vunpack.c.l.b16 %v346
    %v677 = vunpack.c.h.b16 %v346
    %v678 = vunpack.c.l.b16 %v347
    %v679 = vunpack.c.l.b16 %v348
    %v680 = vunpack.c.h.b16 %v348
    %v681 = vunpack.c.l.b16 %v349
    %v682 = vunpack.c.l.b16 %v350
    %v683 = vunpack.c.h.b16 %v350
    %v684 = vunpack.c.l.b16 %v351
    %v685 = vunpack.c.l.b16 %v352
    %v686 = vunpack.c.h.b16 %v352
    %v687 = vunpack.c.l.b16 %v353
    %v688 = vunpack.c.l.b16 %v354
    %v689 = vunpack.c.h.b16 %v354
    %v690 = vunpack.c.l.b16 %v355
    %v691 = vunpack.c.l.b16 %v356
    %v692 = vunpack.c.h.b16 %v356
    %v693 = vunpack.c.l.b16 %v357
    %v694 = vunpack.c.l.b16 %v358
    %v695 = vunpack.c.h.b16 %v358
    %v696 = vunpack.c.l.b16 %v359
    %v697 = vpack.c.b16 %v508, %v505
    %v698 = vpack.c.b16 %v509, %v506
    %v699 = vpack.c.b16 %v510, %v507
    %v700 = vpack.c.b16 %v514, %v511
    %v701 = vpack.c.b16 %v515, %v512
    %v702 = vpack.c.b16 %v516, %v513
    %v703 = vpack.c.b16 %v520, %v517
    %v704 = vpack.c.b16 %v521, %v518
    %v705 = vpack.c.b16 %v522, %v519
    %v706 = vpack.c.b16 %v526, %v523
    %v707 = vpack.c.b16 %v527, %v524
    %v708 = vpack.c.b16 %v528, %v525
    %v709 = vpack.c.b16 %v532, %v529
    %v710 = vpack.c.b16 %v533, %v530
    %v711 = vpack.c.b16 %v534, %v531
    %v712 = vpack.c.b16 %v538, %v535
    %v713 = vpack.c.b16 %v539, %v536
    %v714 = vpack.c.b16 %v540, %v537
    %v715 = vpack.c.b16 %v544, %v541
    %v716 = vpack.c.b16 %v545, %v542
    %v717 = vpack.c.b16 %v546, %v543
    %v718 = vpack.c.b16 %v550, %v547
    %v719 = vpack.c.b16 %v551, %v548
    %v720 = vpack.c.b16 %v552, %v549
    %v721 = vpack.c.b16 %v556, %v553
    %v722 = vpack.c.b16 %v557, %v554
    %v723 = vpack.c.b16 %v558, %v555
    %v724 = vpack.c.b16 %v562, %v559
    %v725 = vpack.c.b16 %v563, %v560
    %v726 = vpack.c.b16 %v564, %v561
    %v727 = vpack.c.b16 %v568, %v565
    %v728 = vpack.c.b16 %v569, %v566
    %v729 = vpack.c.b16 %v570, %v567
    %v730 = vpack.c.b16 %v574, %v571
    %v731 = vpack.c.b16 %v575, %v572
    %v732 = vpack.c.b16 %v576, %v573
    %v733 = vpack.c.b16 %v580, %v577
    %v734 = vpack.c.b16 %v581, %v578
    %v735 = vpack.c.b16 %v582, %v579
    %v736 = vpack.c.b16 %v586, %v583
    %v737 = vpack.c.b16 %v587, %v584
    %v738 = vpack.c.b16 %v588, %v585
    %v739 = vpack.c.b16 %v592, %v589
    %v740 = vpack.c.b16 %v593, %v590
    %v741 = vpack.c.b16 %v594, %v591
    %v742 = vpack.c.b16 %v598, %v595
    %v743 = vpack.c.b16 %v599, %v596
    %v744 = vpack.c.b16 %v600, %v597
    %v745 = vpack.c.b16 %v604, %v601
    %v746 = vpack.c.b16 %v605, %v602
    %v747 = vpack.c.b16 %v606, %v603
    %v748 = vpack.c.b16 %v610, %v607
    %v749 = vpack.c.b16 %v611, %v608
    %v750 = vpack.c.b16 %v612, %v609
    %v751 = vpack.c.b16 %v616, %v613
    %v752 = vpack.c.b16 %v617, %v614
    %v753 = vpack.c.b16 %v618, %v615
    %v754 = vpack.c.b16 %v622, %v619
    %v755 = vpack.c.b16 %v623, %v620
    %v756 = vpack.c.b16 %v624, %v621
    %v757 = vpack.c.b16 %v628, %v625
    %v758 = vpack.c.b16 %v629, %v626
    %v759 = vpack.c.b16 %v630, %v627
    %v760 = vpack.c.b16 %v634, %v631
    %v761 = vpack.c.b16 %v635, %v632
    %v762 = vpack.c.b16 %v636, %v633
    %v763 = vpack.c.b16 %v640, %v637
    %v764 = vpack.c.b16 %v641, %v638
    %v765 = vpack.c.b16 %v642, %v639
    %v766 = vpack.c.b16 %v646, %v643
    %v767 = vpack.c.b16 %v647, %v644
    %v768 = vpack.c.b16 %v648, %v645
    %v769 = vpack.c.b16 %v652, %v649
    %v770 = vpack.c.b16 %v653, %v650
    %v771 = vpack.c.b16 %v654, %v651
    %v772 = vpack.c.b16 %v658, %v655
    %v773 = vpack.c.b16 %v659, %v656
    %v774 = vpack.c.b16 %v660, %v657
    %v775 = vpack.c.b16 %v664, %v661
    %v776 = vpack.c.b16 %v665, %v662
    %v777 = vpack.c.b16 %v666, %v663
    %v778 = vpack.c.b16 %v670, %v667
    %v779 = vpack.c.b16 %v671, %v668
    %v780 = vpack.c.b16 %v672, %v669
    %v781 = vpack.c.b16 %v676, %v673
    %v782 = vpack.c.b16 %v677, %v674
    %v783 = vpack.c.b16 %v678, %v675
    %v784 = vpack.c.b16 %v682, %v679
    %v785 = vpack.c.b16 %v683, %v680
    %v786 = vpack.c.b16 %v684, %v681
    %v787 = vpack.c.b16 %v688, %v685
    %v788 = vpack.c.b16 %v689, %v686
    %v789 = vpack.c.b16 %v690, %v687
    %v790 = vpack.c.b16 %v694, %v691
    %v791 = vpack.c.b16 %v695, %v692
    %v792 = vpack.c.b16 %v696, %v693
    %889 = vmatprep.subr.bf16.mxu0 %v719
    %890 = vmatpush1.bf16.msra.mxu0 %v718
    %891 = vmatprep.subr.bf16.mxu0 %v716
    %892 = vmatpush1.bf16.msra.mxu0 %v715
    %893 = vmatprep.subr.bf16.mxu0 %v713
    %894 = vmatpush1.bf16.msra.mxu0 %v712
    %895 = vmatprep.subr.bf16.mxu0 %v710
    %896 = vmatpush1.bf16.msra.mxu0 %v709
    %897 = vmatprep.subr.bf16.mxu0 %v707
    %898 = vmatpush1.bf16.msra.mxu0 %v706
    %899 = vmatprep.subr.bf16.mxu0 %v704
    %900 = vmatpush1.bf16.msra.mxu0 %v703
    %901 = vmatprep.subr.bf16.mxu0 %v701
    %902 = vmatpush1.bf16.msra.mxu0 %v700
    %903 = vmatprep.subr.bf16.mxu0 %v698
    %904 = vmatpush1.bf16.msra.mxu0 %v697
    %905 = vmatprep.subr.bf16.mxu0 %v743
    %906 = vmatpush2.bf16.msra.mxu0 %v742
    %907 = vmatprep.subr.bf16.mxu0 %v740
    %908 = vmatpush2.bf16.msra.mxu0 %v739
    %909 = vmatprep.subr.bf16.mxu0 %v737
    %910 = vmatpush2.bf16.msra.mxu0 %v736
    %911 = vmatprep.subr.bf16.mxu0 %v734
    %912 = vmatpush2.bf16.msra.mxu0 %v733
    %913 = vmatprep.subr.bf16.mxu0 %v731
    %914 = vmatpush2.bf16.msra.mxu0 %v730
    %915 = vmatprep.subr.bf16.mxu0 %v728
    %916 = vmatpush2.bf16.msra.mxu0 %v727
    %917 = vmatprep.subr.bf16.mxu0 %v725
    %918 = vmatpush2.bf16.msra.mxu0 %v724
    %919 = vmatprep.subr.bf16.mxu0 %v722
    %920 = vmatpush2.bf16.msra.mxu0 %v721
    %921 = vmatprep.mubr.bf16.mxu0 %v229
    %922 = vmatmul.mubr.bf16.gmra.mxu0 %v228
    %v923 = vpop.f32.mrf.mxu0
    %v924 = vadd.f32 %v365, %v923
    %v925 = vpop.f32.mrf.mxu0
    %v926 = vadd.f32 %v369, %v925
    %v927 = vpop.f32.mrf.mxu0
    %v928 = vpop.f32.mrf.mxu0
    %929 = vdwg.mxu0
    %930 = vmatprep.subr.bf16.mxu0 %v767
    %931 = vmatpush1.bf16.msra.mxu0 %v766
    %932 = vmatprep.subr.bf16.mxu0 %v764
    %933 = vmatpush1.bf16.msra.mxu0 %v763
    %934 = vmatprep.subr.bf16.mxu0 %v761
    %935 = vmatpush1.bf16.msra.mxu0 %v760
    %936 = vmatprep.subr.bf16.mxu0 %v758
    %937 = vmatpush1.bf16.msra.mxu0 %v757
    %938 = vmatprep.subr.bf16.mxu0 %v755
    %939 = vmatpush1.bf16.msra.mxu0 %v754
    %940 = vmatprep.subr.bf16.mxu0 %v752
    %941 = vmatpush1.bf16.msra.mxu0 %v751
    %942 = vmatprep.subr.bf16.mxu0 %v749
    %943 = vmatpush1.bf16.msra.mxu0 %v748
    %944 = vmatprep.subr.bf16.mxu0 %v746
    %945 = vmatpush1.bf16.msra.mxu0 %v745
    %946 = vmatprep.subr.bf16.mxu0 %v791
    %947 = vmatpush2.bf16.msra.mxu0 %v790
    %948 = vmatprep.subr.bf16.mxu0 %v788
    %949 = vmatpush2.bf16.msra.mxu0 %v787
    %950 = vmatprep.subr.bf16.mxu0 %v785
    %951 = vmatpush2.bf16.msra.mxu0 %v784
    %952 = vmatprep.subr.bf16.mxu0 %v782
    %953 = vmatpush2.bf16.msra.mxu0 %v781
    %954 = vmatprep.subr.bf16.mxu0 %v779
    %955 = vmatpush2.bf16.msra.mxu0 %v778
    %956 = vmatprep.subr.bf16.mxu0 %v776
    %957 = vmatpush2.bf16.msra.mxu0 %v775
    %958 = vmatprep.subr.bf16.mxu0 %v773
    %959 = vmatpush2.bf16.msra.mxu0 %v772
    %960 = vmatprep.subr.bf16.mxu0 %v770
    %961 = vmatpush2.bf16.msra.mxu0 %v769
    %962 = vmatprep.mubr.bf16.mxu0 %v231
    %963 = vmatmul.mubr.bf16.gmra.mxu0 %v230
    %v964 = vpop.f32.mrf.mxu0
    %v965 = vadd.f32 %v924, %v964
    %v966 = vpop.f32.mrf.mxu0
    %v967 = vadd.f32 %v926, %v966
    %v968 = vpop.f32.mrf.mxu0
    %v969 = vpop.f32.mrf.mxu0
    %970 = vdwg.mxu0
    %971 = vmatprep.subr.bf16.mxu0 0
    %972 = vmatpush1.bf16.msra.mxu0 %v720
    %973 = vmatprep.subr.bf16.mxu0 0
    %974 = vmatpush1.bf16.msra.mxu0 %v717
    %975 = vmatprep.subr.bf16.mxu0 0
    %976 = vmatpush1.bf16.msra.mxu0 %v714
    %977 = vmatprep.subr.bf16.mxu0 0
    %978 = vmatpush1.bf16.msra.mxu0 %v711
    %979 = vmatprep.subr.bf16.mxu0 0
    %980 = vmatpush1.bf16.msra.mxu0 %v708
    %981 = vmatprep.subr.bf16.mxu0 0
    %982 = vmatpush1.bf16.msra.mxu0 %v705
    %983 = vmatprep.subr.bf16.mxu0 0
    %984 = vmatpush1.bf16.msra.mxu0 %v702
    %985 = vmatprep.subr.bf16.mxu0 0
    %986 = vmatpush1.bf16.msra.mxu0 %v699
    %987 = vmatprep.subr.bf16.mxu0 0
    %988 = vmatpush2.bf16.msra.mxu0 %v744
    %989 = vmatprep.subr.bf16.mxu0 0
    %990 = vmatpush2.bf16.msra.mxu0 %v741
    %991 = vmatprep.subr.bf16.mxu0 0
    %992 = vmatpush2.bf16.msra.mxu0 %v738
    %993 = vmatprep.subr.bf16.mxu0 0
    %994 = vmatpush2.bf16.msra.mxu0 %v735
    %995 = vmatprep.subr.bf16.mxu0 0
    %996 = vmatpush2.bf16.msra.mxu0 %v732
    %997 = vmatprep.subr.bf16.mxu0 0
    %998 = vmatpush2.bf16.msra.mxu0 %v729
    %999 = vmatprep.subr.bf16.mxu0 0
    %1000 = vmatpush2.bf16.msra.mxu0 %v726
    %1001 = vmatprep.subr.bf16.mxu0 0
    %1002 = vmatpush2.bf16.msra.mxu0 %v723
    %1003 = vmatprep.mubr.bf16.mxu0 %v229
    %1004 = vmatmul.mubr.bf16.gmra.mxu0 %v228
    %v1005 = vpop.f32.mrf.mxu0
    %v1006 = vadd.f32 %v373, %v1005
    %v1007 = vpop.f32.mrf.mxu0
    %v1008 = vpop.f32.mrf.mxu0
    %v1009 = vpop.f32.mrf.mxu0
    %1010 = vdwg.mxu0
    %1011 = vmatprep.subr.bf16.mxu0 0
    %1012 = vmatpush1.bf16.msra.mxu0 %v768
    %1013 = vmatprep.subr.bf16.mxu0 0
    %1014 = vmatpush1.bf16.msra.mxu0 %v765
    %1015 = vmatprep.subr.bf16.mxu0 0
    %1016 = vmatpush1.bf16.msra.mxu0 %v762
    %1017 = vmatprep.subr.bf16.mxu0 0
    %1018 = vmatpush1.bf16.msra.mxu0 %v759
    %1019 = vmatprep.subr.bf16.mxu0 0
    %1020 = vmatpush1.bf16.msra.mxu0 %v756
    %1021 = vmatprep.subr.bf16.mxu0 0
    %1022 = vmatpush1.bf16.msra.mxu0 %v753
    %1023 = vmatprep.subr.bf16.mxu0 0
    %1024 = vmatpush1.bf16.msra.mxu0 %v750
    %1025 = vmatprep.subr.bf16.mxu0 0
    %1026 = vmatpush1.bf16.msra.mxu0 %v747
    %1027 = vmatprep.subr.bf16.mxu0 0
    %1028 = vmatpush2.bf16.msra.mxu0 %v792
    %1029 = vmatprep.subr.bf16.mxu0 0
    %1030 = vmatpush2.bf16.msra.mxu0 %v789
    %1031 = vmatprep.subr.bf16.mxu0 0
    %1032 = vmatpush2.bf16.msra.mxu0 %v786
    %1033 = vmatprep.subr.bf16.mxu0 0
    %1034 = vmatpush2.bf16.msra.mxu0 %v783
    %1035 = vmatprep.subr.bf16.mxu0 0
    %1036 = vmatpush2.bf16.msra.mxu0 %v780
    %1037 = vmatprep.subr.bf16.mxu0 0
    %1038 = vmatpush2.bf16.msra.mxu0 %v777
    %1039 = vmatprep.subr.bf16.mxu0 0
    %1040 = vmatpush2.bf16.msra.mxu0 %v774
    %1041 = vmatprep.subr.bf16.mxu0 0
    %1042 = vmatpush2.bf16.msra.mxu0 %v771
    %1043 = vmatprep.mubr.bf16.mxu0 %v231
    %1044 = vmatmul.mubr.bf16.gmra.mxu0 %v230
    %v1045 = vpop.f32.mrf.mxu0
    %v1046 = vadd.f32 %v1006, %v1045
    %v1047 = vpop.f32.mrf.mxu0
    %v1048 = vpop.f32.mrf.mxu0
    %v1049 = vpop.f32.mrf.mxu0
    %1050 = vdwg.mxu0
    %v1051 = vmax.f32 %v965, 0.0
    %v1052 = vmax.f32 %v967, 0.0
    %v1053 = vmax.f32 %v1046, 0.0
    %v1054 = vtanh.pop %v1051
    %v1055 = vtanh.pop %v1052
    %v1056 = vtanh.pop %v1053
    %v1057 = vpack.c.bf16 %v1054, %v1054
    %v1058 = vpack.c.bf16 %v1055, %v1055
    %v1059 = vpack.c.bf16 %v1056, %v1056
    %v1060 = vld [vmem:[#allocation10] sm:$0xf]
    %v1061 = vld [vmem:[#allocation10 + $0x4] sm:$0xf]
    %v1062 = vld [vmem:[#allocation10 + $0x8] sm:$0xf]
    %v1063 = vld [vmem:[#allocation10 + $0xc] sm:$0xf]
    %v1064 = vld [vmem:[#allocation10 + $0x10] sm:$0xf]
    %v1065 = vld [vmem:[#allocation10 + $0x14] sm:$0xf]
    %v1066 = vld [vmem:[#allocation10 + $0x18] sm:$0xf]
    %v1067 = vld [vmem:[#allocation10 + $0x1c] sm:$0xf]
    %v1068 = vld [vmem:[#allocation10 + $0x20] sm:$0xf]
    %v1069 = vld [vmem:[#allocation10 + $0x24] sm:$0xf]
    %v1070 = vld [vmem:[#allocation10 + $0x28] sm:$0xf]
    %v1071 = vld [vmem:[#allocation10 + $0x2c] sm:$0xf]
    %v1072 = vld [vmem:[#allocation10 + $0x30] sm:$0xf]
    %v1073 = vld [vmem:[#allocation10 + $0x34] sm:$0xf]
    %v1074 = vld [vmem:[#allocation10 + $0x38] sm:$0xf]
    %v1075 = vld [vmem:[#allocation10 + $0x3c] sm:$0xf]
    %v1076 = vld [vmem:[#allocation10 + $0x40] sm:$0xf]
    %v1077 = vld [vmem:[#allocation10 + $0x44] sm:$0xf]
    %v1078 = vld [vmem:[#allocation10 + $0x48] sm:$0xf]
    %v1079 = vld [vmem:[#allocation10 + $0x4c] sm:$0xf]
    %v1080 = vld [vmem:[#allocation10 + $0x50] sm:$0xf]
    %v1081 = vld [vmem:[#allocation10 + $0x54] sm:$0xf]
    %v1082 = vld [vmem:[#allocation10 + $0x58] sm:$0xf]
    %v1083 = vld [vmem:[#allocation10 + $0x5c] sm:$0xf]
    %v1084 = vld [vmem:[#allocation10 + $0x60] sm:$0xf]
    %v1085 = vld [vmem:[#allocation10 + $0x64] sm:$0xf]
    %v1086 = vld [vmem:[#allocation10 + $0x68] sm:$0xf]
    %v1087 = vld [vmem:[#allocation10 + $0x6c] sm:$0xf]
    %v1088 = vld [vmem:[#allocation10 + $0x70] sm:$0xf]
    %v1089 = vld [vmem:[#allocation10 + $0x74] sm:$0xf]
    %v1090 = vld [vmem:[#allocation10 + $0x78] sm:$0xf]
    %v1091 = vld [vmem:[#allocation10 + $0x7c] sm:$0xf]
    %v1092 = vld [vmem:[#allocation10 + $0x80] sm:$0xf]
    %v1093 = vld [vmem:[#allocation10 + $0x84] sm:$0xf]
    %v1094 = vld [vmem:[#allocation10 + $0x88] sm:$0xf]
    %v1095 = vld [vmem:[#allocation10 + $0x8c] sm:$0xf]
    %v1096 = vld [vmem:[#allocation10 + $0x90] sm:$0xf]
    %v1097 = vld [vmem:[#allocation10 + $0x94] sm:$0xf]
    %v1098 = vld [vmem:[#allocation10 + $0x98] sm:$0xf]
    %v1099 = vld [vmem:[#allocation10 + $0x9c] sm:$0xf]
    %v1100 = vld [vmem:[#allocation10 + $0xa0] sm:$0xf]
    %v1101 = vld [vmem:[#allocation10 + $0xa4] sm:$0xf]
    %v1102 = vld [vmem:[#allocation10 + $0xa8] sm:$0xf]
    %v1103 = vld [vmem:[#allocation10 + $0xac] sm:$0xf]
    %v1104 = vld [vmem:[#allocation10 + $0xb0] sm:$0xf]
    %v1105 = vld [vmem:[#allocation10 + $0xb4] sm:$0xf]
    %v1106 = vld [vmem:[#allocation10 + $0xb8] sm:$0xf]
    %v1107 = vld [vmem:[#allocation10 + $0xbc] sm:$0xf]
    %v1108 = vld [vmem:[%s6] sm:$0x1]
    %v1110 = vlaneseq
    %v1111 = vshrl.u32 %v1110, 7
    %v1112 = vsub.s32 0, %v1111
    %v1113 = vrot.slane %v1108, %v1112
    %v1163 = vunpack.c.l.b16 %v1060
    %v1164 = vunpack.c.l.b16 %v1061
    %v1165 = vunpack.c.l.b16 %v1062
    %v1166 = vunpack.c.l.b16 %v1063
    %v1167 = vunpack.c.l.b16 %v1064
    %v1168 = vunpack.c.l.b16 %v1065
    %v1169 = vunpack.c.l.b16 %v1066
    %v1170 = vunpack.c.l.b16 %v1067
    %v1171 = vunpack.c.l.b16 %v1068
    %v1172 = vunpack.c.l.b16 %v1069
    %v1173 = vunpack.c.l.b16 %v1070
    %v1174 = vunpack.c.l.b16 %v1071
    %v1175 = vunpack.c.l.b16 %v1072
    %v1176 = vunpack.c.l.b16 %v1073
    %v1177 = vunpack.c.l.b16 %v1074
    %v1178 = vunpack.c.l.b16 %v1075
    %v1179 = vunpack.c.l.b16 %v1076
    %v1180 = vunpack.c.l.b16 %v1077
    %v1181 = vunpack.c.l.b16 %v1078
    %v1182 = vunpack.c.l.b16 %v1079
    %v1183 = vunpack.c.l.b16 %v1080
    %v1184 = vunpack.c.l.b16 %v1081
    %v1185 = vunpack.c.l.b16 %v1082
    %v1186 = vunpack.c.l.b16 %v1083
    %v1187 = vunpack.c.l.b16 %v1084
    %v1188 = vunpack.c.l.b16 %v1085
    %v1189 = vunpack.c.l.b16 %v1086
    %v1190 = vunpack.c.l.b16 %v1087
    %v1191 = vunpack.c.l.b16 %v1088
    %v1192 = vunpack.c.l.b16 %v1089
    %v1193 = vunpack.c.l.b16 %v1090
    %v1194 = vunpack.c.l.b16 %v1091
    %v1195 = vunpack.c.l.b16 %v1092
    %v1196 = vunpack.c.l.b16 %v1093
    %v1197 = vunpack.c.l.b16 %v1094
    %v1198 = vunpack.c.l.b16 %v1095
    %v1199 = vunpack.c.l.b16 %v1096
    %v1200 = vunpack.c.l.b16 %v1097
    %v1201 = vunpack.c.l.b16 %v1098
    %v1202 = vunpack.c.l.b16 %v1099
    %v1203 = vunpack.c.l.b16 %v1100
    %v1204 = vunpack.c.l.b16 %v1101
    %v1205 = vunpack.c.l.b16 %v1102
    %v1206 = vunpack.c.l.b16 %v1103
    %v1207 = vunpack.c.l.b16 %v1104
    %v1208 = vunpack.c.l.b16 %v1105
    %v1209 = vunpack.c.l.b16 %v1106
    %v1210 = vunpack.c.l.b16 %v1107
    %v1211 = vpack.c.b16 %v1164, %v1163
    %v1212 = vpack.c.b16 %v1166, %v1165
    %v1213 = vpack.c.b16 %v1168, %v1167
    %v1214 = vpack.c.b16 %v1170, %v1169
    %v1215 = vpack.c.b16 %v1172, %v1171
    %v1216 = vpack.c.b16 %v1174, %v1173
    %v1217 = vpack.c.b16 %v1176, %v1175
    %v1218 = vpack.c.b16 %v1178, %v1177
    %v1219 = vpack.c.b16 %v1180, %v1179
    %v1220 = vpack.c.b16 %v1182, %v1181
    %v1221 = vpack.c.b16 %v1184, %v1183
    %v1222 = vpack.c.b16 %v1186, %v1185
    %v1223 = vpack.c.b16 %v1188, %v1187
    %v1224 = vpack.c.b16 %v1190, %v1189
    %v1225 = vpack.c.b16 %v1192, %v1191
    %v1226 = vpack.c.b16 %v1194, %v1193
    %v1227 = vpack.c.b16 %v1196, %v1195
    %v1228 = vpack.c.b16 %v1198, %v1197
    %v1229 = vpack.c.b16 %v1200, %v1199
    %v1230 = vpack.c.b16 %v1202, %v1201
    %v1231 = vpack.c.b16 %v1204, %v1203
    %v1232 = vpack.c.b16 %v1206, %v1205
    %v1233 = vpack.c.b16 %v1208, %v1207
    %v1234 = vpack.c.b16 %v1210, %v1209
    %1259 = vmatprep.subr.bf16.mxu0 0
    %1260 = vmatpush1.bf16.msra.mxu0 %v1218
    %1261 = vmatprep.subr.bf16.mxu0 0
    %1262 = vmatpush1.bf16.msra.mxu0 %v1217
    %1263 = vmatprep.subr.bf16.mxu0 0
    %1264 = vmatpush1.bf16.msra.mxu0 %v1216
    %1265 = vmatprep.subr.bf16.mxu0 0
    %1266 = vmatpush1.bf16.msra.mxu0 %v1215
    %1267 = vmatprep.subr.bf16.mxu0 0
    %1268 = vmatpush1.bf16.msra.mxu0 %v1214
    %1269 = vmatprep.subr.bf16.mxu0 0
    %1270 = vmatpush1.bf16.msra.mxu0 %v1213
    %1271 = vmatprep.subr.bf16.mxu0 0
    %1272 = vmatpush1.bf16.msra.mxu0 %v1212
    %1273 = vmatprep.subr.bf16.mxu0 0
    %1274 = vmatpush1.bf16.msra.mxu0 %v1211
    %1275 = vmatprep.subr.bf16.mxu0 0
    %1276 = vmatpush2.bf16.msra.mxu0 %v1226
    %1277 = vmatprep.subr.bf16.mxu0 0
    %1278 = vmatpush2.bf16.msra.mxu0 %v1225
    %1279 = vmatprep.subr.bf16.mxu0 0
    %1280 = vmatpush2.bf16.msra.mxu0 %v1224
    %1281 = vmatprep.subr.bf16.mxu0 0
    %1282 = vmatpush2.bf16.msra.mxu0 %v1223
    %1283 = vmatprep.subr.bf16.mxu0 0
    %1284 = vmatpush2.bf16.msra.mxu0 %v1222
    %1285 = vmatprep.subr.bf16.mxu0 0
    %1286 = vmatpush2.bf16.msra.mxu0 %v1221
    %1287 = vmatprep.subr.bf16.mxu0 0
    %1288 = vmatpush2.bf16.msra.mxu0 %v1220
    %1289 = vmatprep.subr.bf16.mxu0 0
    %1290 = vmatpush2.bf16.msra.mxu0 %v1219
    %1291 = vmatprep.mubr.bf16.mxu0 %v1058
    %1292 = vmatmul.mubr.bf16.gmra.mxu0 %v1057
    %v1293 = vpop.f32.mrf.mxu0
    %v1294 = vadd.f32 %v1113, %v1293
    %v1295 = vpop.f32.mrf.mxu0
    %v1296 = vpop.f32.mrf.mxu0
    %v1297 = vpop.f32.mrf.mxu0
    %1298 = vdwg.mxu0
    %1299 = vmatprep.subr.bf16.mxu0 0
    %1300 = vmatpush1.bf16.msra.mxu0 %v1234
    %1301 = vmatprep.subr.bf16.mxu0 0
    %1302 = vmatpush1.bf16.msra.mxu0 %v1233
    %1303 = vmatprep.subr.bf16.mxu0 0
    %1304 = vmatpush1.bf16.msra.mxu0 %v1232
    %1305 = vmatprep.subr.bf16.mxu0 0
    %1306 = vmatpush1.bf16.msra.mxu0 %v1231
    %1307 = vmatprep.subr.bf16.mxu0 0
    %1308 = vmatpush1.bf16.msra.mxu0 %v1230
    %1309 = vmatprep.subr.bf16.mxu0 0
    %1310 = vmatpush1.bf16.msra.mxu0 %v1229
    %1311 = vmatprep.subr.bf16.mxu0 0
    %1312 = vmatpush1.bf16.msra.mxu0 %v1228
    %1313 = vmatprep.subr.bf16.mxu0 0
    %1314 = vmatpush1.bf16.msra.mxu0 %v1227
    %1315 = vmatprep.subr.bf16.mxu0 0
    %1316 = vmatpush2.bf16.msra.mxu0 0
    %1317 = vmatprep.subr.bf16.mxu0 0
    %1318 = vmatpush2.bf16.msra.mxu0 0
    %1319 = vmatprep.subr.bf16.mxu0 0
    %1320 = vmatpush2.bf16.msra.mxu0 0
    %1321 = vmatprep.subr.bf16.mxu0 0
    %1322 = vmatpush2.bf16.msra.mxu0 0
    %1323 = vmatprep.subr.bf16.mxu0 0
    %1324 = vmatpush2.bf16.msra.mxu0 0
    %1325 = vmatprep.subr.bf16.mxu0 0
    %1326 = vmatpush2.bf16.msra.mxu0 0
    %1327 = vmatprep.subr.bf16.mxu0 0
    %1328 = vmatpush2.bf16.msra.mxu0 0
    %1329 = vmatprep.subr.bf16.mxu0 0
    %1330 = vmatpush2.bf16.msra.mxu0 0
    %1331 = vmatprep.mubr.bf16.mxu0 0
    %1332 = vmatmul.mubr.bf16.gmra.mxu0 %v1059
    %v1333 = vpop.f32.mrf.mxu0
    %v1334 = vadd.f32 %v1294, %v1333
    %v1335 = vpop.f32.mrf.mxu0
    %v1336 = vpop.f32.mrf.mxu0
    %v1337 = vpop.f32.mrf.mxu0
    %1338 = vdwg.mxu0
    %v1339 = vmax.f32 %v1334, -1.0
    %v1340 = vmin.f32 %v1339, 1.0
    %1341 = vst [vmem:[#allocation11] sm:$0xff] %v1340
    // Predicated region
    $region50: #{tpu_custom_call.1} parent=1 // pred_check
      _
    $region51: #{tpu_custom_call.1} parent=1 // pred_check_branch
      %1343 = sbr.rel (0) target = $region53
    $region52: #{tpu_custom_call.1} parent=1 // pred_region
      %s1345 = ssub.s32 128, 128
      %1346 = vsyncadd [#allocation4], %s1345
      %s1348 = sshll.u32 [#allocation11], 4
      %s1349 = int_to_ptr.vmem [resolvable:$true] %s1348
      %1351 = dma.vmem_to_hbm [thread:$0]  %s1349, 128, %s7, [#allocation4]
    $region53: #{tpu_custom_call.1} parent=1 // pred_fallthru
      _
    // Predicated region
    $region54: #{tpu_custom_call.1} parent=1 // pred_check
      _
    $region55: #{tpu_custom_call.1} parent=1 // pred_check_branch
      %1353 = sbr.rel (0) target = $region57
    $region56: #{tpu_custom_call.1} parent=1 // pred_region
      %1354 = dma.done [#allocation4], 128
    $region57: #{tpu_custom_call.1} parent=1 // pred_fallthru
      _
    %1355 = vsyncpa [#allocation3], 1
    %1356 = vsyncpa [#allocation6], 1
    %1357 = vsyncpa [#allocation9], 1
    %1358 = vsyncpa [#allocation4], 1

</llo_original>
